<compile_context>
chip_gen: v5e
topology: v5e:2x2
jax: 0.10.0
libtpu: 0.0.40
codegen_flags: <defaults>
</compile_context>

<pallas_src>
import functools

import jax
import jax.numpy as jnp
from jax.experimental import pallas as pl
from jax.experimental.pallas import tpu as pltpu


def _round_up(n, m):
    return ((n + m - 1) // m) * m


def _fused_linear_kernel(x_ref, wt_ref, b_ref, o_ref):
    """o = x @ wt + b  (x: (1,T) bf16, wt: (T,TN) bf16, b/o: (1,TN) f32)."""
    o_ref[...] = (
        jnp.dot(x_ref[...], wt_ref[...], preferred_element_type=jnp.float32)
        + b_ref[...]
    ).astype(o_ref.dtype)


@functools.partial(jax.jit, static_argnames=("tile_n",))
def _fused_generator(x_row, w_t, b_row, *, tile_n):
    """Row-vector fused linear layer on TPU via Pallas.

    x_row: (1, T) bfloat16
    w_t:   (T, N_pad) bfloat16   (transposed vs. nn.Linear.weight, N_pad % tile_n == 0)
    b_row: (1, N_pad) float32
    returns (1, N_pad) float32
    """
    T = x_row.shape[1]
    n_pad = w_t.shape[1]
    assert n_pad % tile_n == 0 and tile_n % 128 == 0
    grid = (n_pad // tile_n,)
    return pl.pallas_call(
        _fused_linear_kernel,
        out_shape=jax.ShapeDtypeStruct((1, n_pad), jnp.float32),
        grid_spec=pl.GridSpec(
            grid=grid,
            in_specs=[
                # x stays VMEM-resident across the N grid.
                pl.BlockSpec((1, T), lambda j: (0, 0)),
                # Weight tiles stream along the output-feature axis.
                pl.BlockSpec((T, tile_n), lambda j: (0, j)),
                # Bias tiles follow the output-feature axis.
                pl.BlockSpec((1, tile_n), lambda j: (0, j)),
            ],
            out_specs=pl.BlockSpec((1, tile_n), lambda j: (0, j)),
        ),
        compiler_params=pltpu.CompilerParams(
            # Independent output-feature tiles: shard across TCs on v7x.
            dimension_semantics=("parallel",),
        ),
    )(x_row, w_t, b_row)


class AdapterHyperNetPallas:
    """JAX/Pallas re-implementation of AdapterHyperNet's forward pass."""

    # Largest N tile (multiple of 128). With bf16 weights and T up to ~1K this
    # keeps 2x double-buffered weight tiles well under the 32 MiB scoped-VMEM
    # default on all of v5e/v6e/v7x.
    _MAX_TILE_N = 2048

    def __init__(self, key, task_embedding_dim, input_dim, output_dim, std=0.01):
        self.task_embedding_dim = task_embedding_dim
        self.input_dim = input_dim
        self.output_dim = output_dim

        k_w, k_b = jax.random.split(key)
        # weight_generator: Linear(task_embedding_dim, input_dim * output_dim)
        #   nn.Linear.weight shape: (out_features, in_features), normal(std=0.01)
        #   bias: zeros
        wg_weight = std * jax.random.normal(
            k_w, (input_dim * output_dim, task_embedding_dim), jnp.float32
        )
        wg_bias = jnp.zeros((input_dim * output_dim,), jnp.float32)
        # bias_generator: Linear(task_embedding_dim, input_dim)
        bg_weight = std * jax.random.normal(
            k_b, (input_dim, task_embedding_dim), jnp.float32
        )
        bg_bias = jnp.zeros((input_dim,), jnp.float32)

        # --- Fuse the two generators along the output-feature axis ----------
        # Pre-transpose to (T, N) layout, concatenate, then pad N up so the
        # output is lane-dense (multiple of 128) and divisible by the tile.
        n_weight = input_dim * output_dim
        n_raw = n_weight + input_dim
        tile_n = min(self._MAX_TILE_N, _round_up(n_raw, 128))
        n_pad = _round_up(n_raw, tile_n)

        w_t = jnp.concatenate([wg_weight.T, bg_weight.T], axis=1)   # (T, n_raw) f32
        b_row = jnp.concatenate([wg_bias, bg_bias], axis=0)         # (n_raw,)  f32
        if n_pad != n_raw:
            w_t = jnp.pad(w_t, ((0, 0), (0, n_pad - n_raw)))
            b_row = jnp.pad(b_row, (0, n_pad - n_raw))

        # Weights in bf16 (HBM-bandwidth bound read, f32 accumulation in-kernel).
        self.fused_weight_t = w_t.astype(jnp.bfloat16)   # (T, n_pad) bf16
        self.fused_bias_row = b_row[None, :]              # (1, n_pad) f32

        self.n_weight = n_weight
        self.n_raw = n_raw
        self.n_pad = n_pad
        self.tile_n = tile_n

    def __call__(self, task_embedding):
        # task_embedding.view(-1) — a single flattened task embedding.
        t = jnp.reshape(task_embedding, (1, -1)).astype(jnp.bfloat16)  # (1, T)
        assert t.shape[1] == self.task_embedding_dim

        fused = _fused_generator(
            t, self.fused_weight_t, self.fused_bias_row, tile_n=self.tile_n
        )  # (1, n_pad) f32

        weight = jnp.reshape(
            fused[0, : self.n_weight], (self.input_dim, self.output_dim)
        )
        bias = fused[0, self.n_weight: self.n_raw]
        return weight, bias


def _reference_forward(module, task_embedding):
    """Pure-jnp reference (same bf16 weights, f32 accumulation) for validation."""
    t = jnp.reshape(task_embedding, (-1,)).astype(jnp.bfloat16).astype(jnp.float32)
    w_t = module.fused_weight_t.astype(jnp.float32)
    fused = t @ w_t + module.fused_bias_row[0]
    w = fused[: module.n_weight].reshape(module.input_dim, module.output_dim)
    b = fused[module.n_weight: module.n_raw]
    return w, b


if __name__ == "__main__":
    # Small shapes consistent with the module's config fields:
    #   task_embedding_dim = 32, input_dim = 16, output_dim = 8
    TASK_EMB_DIM = 32
    INPUT_DIM = 16
    OUTPUT_DIM = 8

    key = jax.random.PRNGKey(0)
    k_params, k_input = jax.random.split(key)

    model = AdapterHyperNetPallas(
        k_params,
        task_embedding_dim=TASK_EMB_DIM,
        input_dim=INPUT_DIM,
        output_dim=OUTPUT_DIM,
        std=0.01,
    )

    # task_embedding arrives with an arbitrary leading shape; forward flattens it.
    task_embedding = jax.random.normal(k_input, (1, TASK_EMB_DIM), jnp.float32)

    weight, bias = model(task_embedding)
    jax.block_until_ready((weight, bias))

    # Validate against pure-jnp reference (bf16 inputs, f32 accumulation — same
    # numerics as the MXU path, so a tight tolerance still holds).
    w_ref, b_ref = _reference_forward(model, task_embedding)
    assert weight.shape == (INPUT_DIM, OUTPUT_DIM)
    assert bias.shape == (INPUT_DIM,)
    assert jnp.allclose(weight, w_ref, atol=1e-3, rtol=1e-2)
    assert jnp.allclose(bias, b_ref, atol=1e-3, rtol=1e-2)

    print("KERNEL_OK")
</pallas_src>

<mosaic_0001>
module attributes {stable_mosaic.version = 11 : i64} {
  func.func @_fused_linear_kernel(%arg0: i32, %arg1: memref<1x32xbf16, #tpu.memory_space<vmem>>, %arg2: memref<32x256xbf16, #tpu.memory_space<vmem>>, %arg3: memref<1x256xf32, #tpu.memory_space<vmem>>, %arg4: memref<1x256xf32, #tpu.memory_space<vmem>>) attributes {dimension_semantics = [#tpu.dimension_semantics<parallel>], iteration_bounds = array<i64: 1>, scalar_prefetch = 0 : i64, scratch_operands = 0 : i64, tpu.core_type = #tpu.core_type<tc>, window_params = [{pipeline_mode = #tpu.pipeline_mode<synchronous>, transform_indices = @transform_0, window_bounds = array<i64: 1, 32>}, {transform_indices = @transform_1, window_bounds = array<i64: 32, 256>}, {transform_indices = @transform_2, window_bounds = array<i64: 1, 256>}, {transform_indices = @transform_3, window_bounds = array<i64: 1, 256>}]} {
    %c0 = arith.constant 0 : index
    %c0_0 = arith.constant 0 : index
    %0 = vector.load %arg1[%c0, %c0_0] : memref<1x32xbf16, #tpu.memory_space<vmem>>, vector<1x32xbf16>
    %c0_1 = arith.constant 0 : index
    %c0_2 = arith.constant 0 : index
    %1 = vector.load %arg2[%c0_1, %c0_2] : memref<32x256xbf16, #tpu.memory_space<vmem>>, vector<32x256xbf16>
    %cst = arith.constant dense<0.000000e+00> : vector<1x256xf32>
    %2 = tpu.matmul %0, %1, %cst {dimension_numbers = #tpu.dot_dimension_numbers<[1], [0], [0], [1], [0, 0, 1, 1], [], []>} : vector<1x32xbf16>, vector<32x256xbf16>, vector<1x256xf32> -> vector<1x256xf32>
    %c0_3 = arith.constant 0 : index
    %c0_4 = arith.constant 0 : index
    %3 = vector.load %arg3[%c0_3, %c0_4] : memref<1x256xf32, #tpu.memory_space<vmem>>, vector<1x256xf32>
    %4 = arith.addf %2, %3 : vector<1x256xf32>
    %c0_5 = arith.constant 0 : index
    %c0_6 = arith.constant 0 : index
    %5 = vector.load %arg4[%c0_5, %c0_6] : memref<1x256xf32, #tpu.memory_space<vmem>>, vector<1x256xf32>
    tpu.vector_store %arg4[%c0_5, %c0_6], %4 {strides = array<i32>} : memref<1x256xf32, #tpu.memory_space<vmem>>, vector<1x256xf32>,
    return
  }
  func.func @transform_0(%arg0: i32) -> (i32, i32) {
    %c0_i32 = arith.constant 0 : i32
    %c0_i32_0 = arith.constant 0 : i32
    %c0_i32_1 = arith.constant 0 : i32
    return %c0_i32, %c0_i32_0 : i32, i32
  }
  func.func @transform_1(%arg0: i32) -> (i32, i32) {
    %c0_i32 = arith.constant 0 : i32
    %c0_i32_0 = arith.constant 0 : i32
    return %c0_i32, %arg0 : i32, i32
  }
  func.func @transform_2(%arg0: i32) -> (i32, i32) {
    %c0_i32 = arith.constant 0 : i32
    %c0_i32_0 = arith.constant 0 : i32
    return %c0_i32, %arg0 : i32, i32
  }
  func.func @transform_3(%arg0: i32) -> (i32, i32) {
    %c0_i32 = arith.constant 0 : i32
    %c0_i32_0 = arith.constant 0 : i32
    return %c0_i32, %arg0 : i32, i32
  }
}

</mosaic_0001>

<llo_original>
// kernel: _fused_generator.1
$region0: #{_fused_generator.1}
  #allocation0 [shape = 'u32[]', space=smem, size = 0x4, offset = 0x4, fixed_abs, tag = 'smem constant byte address 0x4 - core index']
  #allocation1 [shape = 'u32[72,128]{1,0:T(1,128)}', space=vmem, size = 0x9000, scoped, tag = 'internal scratch']
  %s0 = inlined_call_operand.hbm [shape: bf16[1,32], index: 0, kind: input, shape index: {}]
  %s1 = inlined_call_operand.hbm [shape: bf16[32,256], index: 1, kind: input, shape index: {}]
  %s2 = inlined_call_operand.hbm [shape: f32[1,256], index: 2, kind: input, shape index: {}]
  %s3 = inlined_call_operand.hbm [shape: f32[1,256], index: 3, kind: output, shape index: {}]
  %s4 = sld [smem:[#allocation0]]
  $region34: #{_fused_generator.1} parent=0
    _
  %s6 = ssub.s32 1, %s4
  %s7 = scalar_select 0, %s6, %s4
  $region1: #{_fused_generator.1} parent=0
    #allocation2 [shape = 'u8[512]{0}', space=vmem, size = 0x400, scoped, tag = 'input window, operand 0, single buffered']
    #allocation3 [shape = 's32[1]{0}', space=sflag, size = 0x4, scoped, tag = 'scoped memory for _fused_generator.1']
    #allocation4 [shape = 's32[1]{0}', space=sflag, size = 0x4, scoped, tag = 'scoped memory for _fused_generator.1']
    #allocation5 [shape = 'u8[16384]{0}', space=vmem, size = 0x4000, scoped, tag = 'input window, operand 1, single buffered']
    #allocation6 [shape = 's32[1]{0}', space=sflag, size = 0x4, scoped, tag = 'scoped memory for _fused_generator.1']
    #allocation7 [shape = 'u8[1024]{0}', space=vmem, size = 0x400, scoped, tag = 'input window, operand 2, single buffered']
    #allocation8 [shape = 'u8[1024]{0}', space=vmem, size = 0x400, scoped, tag = 'output window, operand 0, single buffered']
    %8 = vsyncpa [#allocation3], 0
    %9 = vsyncpa [#allocation6], 0
    %10 = vsyncpa [#allocation4], 0
    // Predicated region
    $region2: #{_fused_generator.1} parent=1 // pred_check
      _
    $region3: #{_fused_generator.1} parent=1 // pred_check_branch
      %12 = sbr.rel (0) target = $region5
    $region4: #{_fused_generator.1} parent=1 // pred_region
      %14 = vsyncadd [#allocation3], 0
      %s16 = sshll.u32 %s0, 4
      %s17 = int_to_ptr.hbm [resolvable:$true] %s16
      %s18 = sshll.u32 [#allocation2], 4
      %s19 = int_to_ptr.vmem [resolvable:$true] %s18
      %21 = dma.hbm_to_vmem [thread:$0]  %s17, 16, %s19, [#allocation3]
    $region5: #{_fused_generator.1} parent=1 // pred_fallthru
      _
    // Predicated region
    $region6: #{_fused_generator.1} parent=1 // pred_check
      _
    $region7: #{_fused_generator.1} parent=1 // pred_check_branch
      %23 = sbr.rel (0) target = $region9
    $region8: #{_fused_generator.1} parent=1 // pred_region
      %25 = vsyncadd [#allocation6], 0
      %s26 = sshll.u32 %s1, 4
      %s27 = int_to_ptr.hbm [resolvable:$true] %s26
      %s28 = sshll.u32 [#allocation5], 4
      %s29 = int_to_ptr.vmem [resolvable:$true] %s28
      %34 = dma.hbm_to_vmem [thread:$0]  %s27, 512, %s29, [#allocation6], 128, 128, 8
    $region9: #{_fused_generator.1} parent=1 // pred_fallthru
      _
    // Predicated region
    $region10: #{_fused_generator.1} parent=1 // pred_check
      _
    $region11: #{_fused_generator.1} parent=1 // pred_check_branch
      %36 = sbr.rel (0) target = $region13
    $region12: #{_fused_generator.1} parent=1 // pred_region
      %38 = vsyncadd [#allocation6], 0
      %s40 = sshll.u32 %s2, 4
      %s41 = int_to_ptr.hbm [resolvable:$true] %s40
      %s42 = sshll.u32 [#allocation7], 4
      %s43 = int_to_ptr.vmem [resolvable:$true] %s42
      %45 = dma.hbm_to_vmem [thread:$0]  %s41, 32, %s43, [#allocation6]
    $region13: #{_fused_generator.1} parent=1 // pred_fallthru
      _
    // Predicated region
    $region14: #{_fused_generator.1} parent=1 // pred_check
      _
    $region15: #{_fused_generator.1} parent=1 // pred_check_branch
      %47 = sbr.rel (0) target = $region17
    $region16: #{_fused_generator.1} parent=1 // pred_region
      %49 = dma.done [#allocation3], 16
    $region17: #{_fused_generator.1} parent=1 // pred_fallthru
      _
    // Predicated region
    $region18: #{_fused_generator.1} parent=1 // pred_check
      _
    $region19: #{_fused_generator.1} parent=1 // pred_check_branch
      %51 = sbr.rel (0) target = $region21
    $region20: #{_fused_generator.1} parent=1 // pred_region
      %53 = dma.done [#allocation6], 512
    $region21: #{_fused_generator.1} parent=1 // pred_fallthru
      _
    // Predicated region
    $region22: #{_fused_generator.1} parent=1 // pred_check
      _
    $region23: #{_fused_generator.1} parent=1 // pred_check_branch
      %55 = sbr.rel (0) target = $region25
    $region24: #{_fused_generator.1} parent=1 // pred_region
      %57 = dma.done [#allocation6], 32
    $region25: #{_fused_generator.1} parent=1 // pred_fallthru
      _
    %v59 = vld [vmem:[#allocation2] sm:$0x1]
    %v60 = vld [vmem:[#allocation5] sm:$0xff]
    %v61 = vld [vmem:[#allocation5 + $0x8] sm:$0xff]
    %v62 = vld [vmem:[#allocation5 + $0x10] sm:$0xff]
    %v63 = vld [vmem:[#allocation5 + $0x18] sm:$0xff]
    %v64 = vld [vmem:[#allocation7] sm:$0x3]
    %v69 = vunpack.c.l.b16 %v60
    %v70 = vunpack.c.h.b16 %v60
    %v71 = vunpack.c.l.b16 %v61
    %v72 = vunpack.c.h.b16 %v61
    %v73 = vunpack.c.l.b16 %v62
    %v74 = vunpack.c.h.b16 %v62
    %v75 = vunpack.c.l.b16 %v63
    %v76 = vunpack.c.h.b16 %v63
    %v77 = vpack.c.b16 %v71, %v69
    %v78 = vpack.c.b16 %v72, %v70
    %v79 = vpack.c.b16 %v75, %v73
    %v80 = vpack.c.b16 %v76, %v74
    %v86 = vperm.slane %v64, 0
    %v87 = vperm.slane %v64, 1
    %vm90 = vcmask 261120
    %v92 = vsel %vm90, %v59, 0
    %94 = vmatpush.bf16.msra.mxu0 0
    %95 = vmatpush.bf16.msra.mxu0 0
    %96 = vmatpush.bf16.msra.mxu0 0
    %97 = vmatpush.bf16.msra.mxu0 0
    %98 = vmatpush.bf16.msra.mxu0 0
    %99 = vmatpush.bf16.msra.mxu0 0
    %100 = vmatpush.bf16.msra.mxu0 %v79
    %101 = vmatpush.bf16.msra.mxu0 %v77
    %102 = vmatmul.bf16.gmra.mxu0 %v92
    %v103 = vpop.f32.mrf.mxu0
    %v104 = vadd.f32 %v86, %v103
    %v105 = vpop.f32.mrf.mxu0
    %106 = vdwg.mxu0
    %107 = vmatpush.bf16.msra.mxu0 0
    %108 = vmatpush.bf16.msra.mxu0 0
    %109 = vmatpush.bf16.msra.mxu0 0
    %110 = vmatpush.bf16.msra.mxu0 0
    %111 = vmatpush.bf16.msra.mxu0 0
    %112 = vmatpush.bf16.msra.mxu0 0
    %113 = vmatpush.bf16.msra.mxu0 %v80
    %114 = vmatpush.bf16.msra.mxu0 %v78
    %115 = vmatmul.bf16.gmra.mxu0 %v92
    %v116 = vpop.f32.mrf.mxu0
    %v117 = vadd.f32 %v87, %v116
    %v118 = vpop.f32.mrf.mxu0
    %119 = vdwg.mxu0
    %v122 = vrot.slane %v117, 7
    %vm123 = vcmask 1040384
    %v124 = vsel %vm123, %v104, %v122
    %v126 = vlaneseq
    %vm127 = vcmp.ge.s32.totalorder %v126, 0
    %vm128 = vcmp.lt.s32.totalorder %v126, 256
    %vm129 = vmand %vm127, %vm128
    %130 = vst.msk [vmem:[#allocation8] sm:$0x3] %vm129, %v124
    // Predicated region
    $region26: #{_fused_generator.1} parent=1 // pred_check
      _
    $region27: #{_fused_generator.1} parent=1 // pred_check_branch
      %132 = sbr.rel (0) target = $region29
    $region28: #{_fused_generator.1} parent=1 // pred_region
      %134 = vsyncadd [#allocation4], 0
      %s136 = sshll.u32 [#allocation8], 4
      %s137 = int_to_ptr.vmem [resolvable:$true] %s136
      %s138 = sshll.u32 %s3, 4
      %s139 = int_to_ptr.hbm [resolvable:$true] %s138
      %141 = dma.vmem_to_hbm [thread:$0]  %s137, 32, %s139, [#allocation4]
    $region29: #{_fused_generator.1} parent=1 // pred_fallthru
      _
    // Predicated region
    $region30: #{_fused_generator.1} parent=1 // pred_check
      _
    $region31: #{_fused_generator.1} parent=1 // pred_check_branch
      %143 = sbr.rel (0) target = $region33
    $region32: #{_fused_generator.1} parent=1 // pred_region
      %145 = dma.done [#allocation4], 32
    $region33: #{_fused_generator.1} parent=1 // pred_fallthru
      _
    %146 = vsyncpa [#allocation3], 1
    %147 = vsyncpa [#allocation6], 1
    %148 = vsyncpa [#allocation4], 1

</llo_original>
